<compile_context>
chip_gen: v7x
topology: tpu7x:2x2x1
jax: 0.10.0
libtpu: 0.0.40
codegen_flags: <defaults>
</compile_context>

<pallas_src>
import functools

import numpy as np
import jax
import jax.numpy as jnp
from jax.experimental import pallas as pl
from jax.experimental.pallas import tpu as pltpu

LANE = 128
SUBLANE = 8


def _round_up(x, m):
    return ((x + m - 1) // m) * m


def _pick_batch_tile(batch, *, tb_max=512, min_steps=4):
    """Pick the batch tile TB.

    Small batches: a single sublane-aligned step (minimal padding).
    Large batches: a 128-multiple tile sized so the grid has >= min_steps steps
    (restores DMA/compute overlap and lets megacore shard the batch) while keeping
    round_up(B, TB) padding small.
    """
    b8 = _round_up(batch, SUBLANE)
    if b8 <= LANE:
        return b8
    tb = _round_up(-(-b8 // min_steps), LANE)   # ceil(b8/min_steps) rounded to 128
    return max(LANE, min(tb, tb_max))


def actor_policy_kernel(
    obs_ref,        # [TB, OBS_P]   compute_dtype
    w_rep_ref,      # [OBS_P, REP_P]
    b_rep_ref,      # [1, REP_P]    f32
    w_h_ref,        # [REP_P, HID_P]
    b_h_ref,        # [1, HID_P]    f32
    w_mu_ref,       # [HID_P, ACT_P]
    b_mu_ref,       # [1, ACT_P]    f32
    *out_refs,      # ([TB, REP_P] state,) [TB, ACT_P] mu
    emit_state: bool,
):
    if emit_state:
        state_ref, mu_ref = out_refs
    else:
        (mu_ref,) = out_refs

    # --- representation: Basic_MLP, one hidden layer with ReLU ---
    h_rep = (
        jnp.dot(obs_ref[...], w_rep_ref[...], preferred_element_type=jnp.float32)
        + b_rep_ref[...]
    )
    state = jnp.maximum(h_rep, 0.0)                      # f32 VPU (v5e-safe)
    if emit_state:
        state_ref[...] = state.astype(state_ref.dtype)

    # --- actor hidden layer: Linear + Tanh ---
    h = (
        jnp.dot(state.astype(w_h_ref.dtype), w_h_ref[...],
                preferred_element_type=jnp.float32)
        + b_h_ref[...]
    )
    h = jnp.tanh(h)                                      # EUP tanh

    # --- actor output head: Linear + Tanh (activation_action) ---
    mu = (
        jnp.dot(h.astype(w_mu_ref.dtype), w_mu_ref[...],
                preferred_element_type=jnp.float32)
        + b_mu_ref[...]
    )
    mu_ref[...] = jnp.tanh(mu).astype(mu_ref.dtype)


def _pad2(x, rows, cols, dtype):
    """Zero-pad a 2-D array to [rows, cols] and cast."""
    r, c = x.shape
    return jnp.pad(x.astype(dtype), ((0, rows - r), (0, cols - c)))


def actor_policy_forward(obs, params, *, compute_dtype=jnp.bfloat16,
                         return_state=True, tb_max=512, min_steps=4):
    """Fused representation + actor forward. Returns (state | None, mu, std)."""
    w_rep, b_rep, w_h, b_h, w_mu, b_mu, logstd = params
    B, OBS = obs.shape
    REP = w_rep.shape[1]
    HID = w_h.shape[1]
    ACT = w_mu.shape[1]

    # Lane-aligned (128) feature dims so every store is a full, unmasked vst.
    OBS_P = _round_up(OBS, LANE)
    REP_P = _round_up(REP, LANE)
    HID_P = _round_up(HID, LANE)
    ACT_P = _round_up(ACT, LANE)

    TB = _pick_batch_tile(B, tb_max=tb_max, min_steps=min_steps)
    B_P = _round_up(B, TB)
    grid = (B_P // TB,)

    # Host-side zero padding (padded lanes/rows contribute exact zeros everywhere).
    obs_p   = _pad2(obs, B_P, OBS_P, compute_dtype)
    w_rep_p = _pad2(w_rep, OBS_P, REP_P, compute_dtype)
    b_rep_p = _pad2(b_rep, 1, REP_P, jnp.float32)
    w_h_p   = _pad2(w_h, REP_P, HID_P, compute_dtype)
    b_h_p   = _pad2(b_h, 1, HID_P, jnp.float32)
    w_mu_p  = _pad2(w_mu, HID_P, ACT_P, compute_dtype)
    b_mu_p  = _pad2(b_mu, 1, ACT_P, jnp.float32)

    batch_spec = lambda cols: pl.BlockSpec((TB, cols), lambda i: (i, 0))
    # Constant-index weights/biases: fetched once, single-buffered (no 2nd VMEM copy).
    weight_spec = lambda rows, cols: pl.BlockSpec(
        (rows, cols), lambda i: (0, 0), pipeline_mode=pl.Buffered(1))

    item = np.dtype(compute_dtype).itemsize
    weight_elems = OBS_P * REP_P + REP_P * HID_P + HID_P * ACT_P
    bias_elems = REP_P + HID_P + ACT_P
    act_tile_elems = TB * (OBS_P + ACT_P + (REP_P if return_state else 0))

    # Right-sized VMEM request: double-buffered batch tiles + single-buffered weights,
    # with 2x headroom; never ask for more than 32 MiB (v7x TC has only 64 MiB total).
    vmem_need = 2 * act_tile_elems * item + weight_elems * item + 4 * bias_elems
    vmem_limit = int(min(32 << 20, max(8 << 20, 2 * vmem_need)))

    flops = 2 * B_P * (OBS_P * REP_P + REP_P * HID_P + HID_P * ACT_P)
    bytes_accessed = int(
        item * (B_P * (OBS_P + ACT_P + (REP_P if return_state else 0)) + weight_elems)
        + 4 * bias_elems
    )

    mu_shape = jax.ShapeDtypeStruct((B_P, ACT_P), compute_dtype)
    if return_state:
        out_shape = (jax.ShapeDtypeStruct((B_P, REP_P), compute_dtype), mu_shape)
        out_specs = (batch_spec(REP_P), batch_spec(ACT_P))
    else:
        out_shape = (mu_shape,)
        out_specs = (batch_spec(ACT_P),)

    results = pl.pallas_call(
        functools.partial(actor_policy_kernel, emit_state=return_state),
        out_shape=out_shape,
        grid=grid,
        in_specs=[
            batch_spec(OBS_P),
            weight_spec(OBS_P, REP_P), weight_spec(1, REP_P),
            weight_spec(REP_P, HID_P), weight_spec(1, HID_P),
            weight_spec(HID_P, ACT_P), weight_spec(1, ACT_P),
        ],
        out_specs=out_specs,
        compiler_params=pltpu.CompilerParams(
            dimension_semantics=("parallel",),      # megacore shard over batch tiles
            vmem_limit_bytes=vmem_limit,
        ),
        cost_estimate=pl.CostEstimate(
            flops=flops,
            transcendentals=B_P * (HID_P + ACT_P),
            bytes_accessed=bytes_accessed,
        ),
    )(obs_p, w_rep_p, b_rep_p, w_h_p, b_h_p, w_mu_p, b_mu_p)

    if return_state:
        state_p, mu_p = results
        state = state_p[:B, :REP]
    else:
        (mu_p,) = results
        state = None
    mu = mu_p[:B, :ACT]
    # DiagGaussian std = exp(logstd): tiny per-action op, done in plain JAX.
    std = jnp.exp(logstd)
    return state, mu, std


def init_params(key, obs_dim, rep_dim, hid_dim, act_dim):
    ks = jax.random.split(key, 6)
    scale = 0.1
    w_rep = scale * jax.random.normal(ks[0], (obs_dim, rep_dim), jnp.float32)
    b_rep = scale * jax.random.normal(ks[1], (1, rep_dim), jnp.float32)
    w_h   = scale * jax.random.normal(ks[2], (rep_dim, hid_dim), jnp.float32)
    b_h   = scale * jax.random.normal(ks[3], (1, hid_dim), jnp.float32)
    w_mu  = scale * jax.random.normal(ks[4], (hid_dim, act_dim), jnp.float32)
    b_mu  = scale * jax.random.normal(ks[5], (1, act_dim), jnp.float32)
    logstd = -jnp.ones((act_dim,), jnp.float32)   # nn.Parameter(-torch.ones(action_dim))
    return (w_rep, b_rep, w_h, b_h, w_mu, b_mu, logstd)


def reference_forward(obs, params):
    """Plain-JAX reference of the same forward pass (for sanity checking)."""
    w_rep, b_rep, w_h, b_h, w_mu, b_mu, logstd = params
    state = jnp.maximum(obs @ w_rep + b_rep, 0.0)
    h = jnp.tanh(state @ w_h + b_h)
    mu = jnp.tanh(h @ w_mu + b_mu)
    std = jnp.exp(logstd)
    return state, mu, std


if __name__ == "__main__":
    key = jax.random.PRNGKey(0)
    k_obs, k_par, k_obs2 = jax.random.split(key, 3)

    OBS, REP, HID, ACT = 16, 32, 32, 4
    params = init_params(k_par, OBS, REP, HID, ACT)

    # 1) Tiny batch, f32 path (tight numerical check), state + mu outputs.
    B1 = 8
    obs1 = jax.random.normal(k_obs, (B1, OBS), jnp.float32)
    fwd_f32 = jax.jit(functools.partial(actor_policy_forward,
                                        compute_dtype=jnp.float32,
                                        return_state=True))
    state, mu, std = jax.block_until_ready(fwd_f32(obs1, params))
    state_r, mu_r, std_r = reference_forward(obs1, params)
    assert state.shape == (B1, REP) and mu.shape == (B1, ACT) and std.shape == (ACT,)
    assert jnp.allclose(state, state_r, atol=1e-5)
    assert jnp.allclose(mu, mu_r, atol=1e-5)
    assert jnp.allclose(std, std_r, atol=1e-6)

    # 2) Larger batch, bf16 I/O path, multi-step grid (pipelined + megacore),
    #    mu-only acting path (no state writeback). Looser tolerance for bf16.
    B2 = 384
    obs2 = jax.random.normal(k_obs2, (B2, OBS), jnp.float32)
    fwd_bf16 = jax.jit(functools.partial(actor_policy_forward,
                                         compute_dtype=jnp.bfloat16,
                                         return_state=False))
    _, mu2, std2 = jax.block_until_ready(fwd_bf16(obs2, params))
    _, mu2_r, _ = reference_forward(obs2, params)
    assert mu2.shape == (B2, ACT)
    assert jnp.allclose(mu2.astype(jnp.float32), mu2_r, atol=5e-2, rtol=5e-2)
    assert jnp.allclose(std2, std_r, atol=1e-6)

    print("KERNEL_OK")
</pallas_src>

<mosaic_0001>
module attributes {stable_mosaic.version = 11 : i64} {
  func.func @actor_policy_kernel(%arg0: i32, %arg1: memref<8x128xf32, #tpu.memory_space<vmem>>, %arg2: memref<128x128xf32, #tpu.memory_space<vmem>>, %arg3: memref<1x128xf32, #tpu.memory_space<vmem>>, %arg4: memref<128x128xf32, #tpu.memory_space<vmem>>, %arg5: memref<1x128xf32, #tpu.memory_space<vmem>>, %arg6: memref<128x128xf32, #tpu.memory_space<vmem>>, %arg7: memref<1x128xf32, #tpu.memory_space<vmem>>, %arg8: memref<8x128xf32, #tpu.memory_space<vmem>>, %arg9: memref<8x128xf32, #tpu.memory_space<vmem>>) attributes {dimension_semantics = [#tpu.dimension_semantics<parallel>], iteration_bounds = array<i64: 1>, scalar_prefetch = 0 : i64, scratch_operands = 0 : i64, tpu.core_type = #tpu.core_type<tc>, window_params = [{transform_indices = @transform_0, window_bounds = array<i64: 8, 128>}, {pipeline_mode = #tpu.pipeline_mode<synchronous>, transform_indices = @transform_1, window_bounds = array<i64: 128, 128>}, {pipeline_mode = #tpu.pipeline_mode<synchronous>, transform_indices = @transform_2, window_bounds = array<i64: 1, 128>}, {pipeline_mode = #tpu.pipeline_mode<synchronous>, transform_indices = @transform_3, window_bounds = array<i64: 128, 128>}, {pipeline_mode = #tpu.pipeline_mode<synchronous>, transform_indices = @transform_4, window_bounds = array<i64: 1, 128>}, {pipeline_mode = #tpu.pipeline_mode<synchronous>, transform_indices = @transform_5, window_bounds = array<i64: 128, 128>}, {pipeline_mode = #tpu.pipeline_mode<synchronous>, transform_indices = @transform_6, window_bounds = array<i64: 1, 128>}, {transform_indices = @transform_7, window_bounds = array<i64: 8, 128>}, {transform_indices = @transform_8, window_bounds = array<i64: 8, 128>}]} {
    %c0 = arith.constant 0 : index
    %c0_0 = arith.constant 0 : index
    %0 = vector.load %arg1[%c0, %c0_0] : memref<8x128xf32, #tpu.memory_space<vmem>>, vector<8x128xf32>
    %c0_1 = arith.constant 0 : index
    %c0_2 = arith.constant 0 : index
    %1 = vector.load %arg2[%c0_1, %c0_2] : memref<128x128xf32, #tpu.memory_space<vmem>>, vector<128x128xf32>
    %cst = arith.constant dense<0.000000e+00> : vector<8x128xf32>
    %2 = tpu.matmul %0, %1, %cst {dimension_numbers = #tpu.dot_dimension_numbers<[1], [0], [0], [1], [0, 0, 1, 1], [], []>} : vector<8x128xf32>, vector<128x128xf32>, vector<8x128xf32> -> vector<8x128xf32>
    %c0_3 = arith.constant 0 : index
    %c0_4 = arith.constant 0 : index
    %3 = vector.load %arg3[%c0_3, %c0_4] : memref<1x128xf32, #tpu.memory_space<vmem>>, vector<1x128xf32>
    %4 = vector.broadcast %3 : vector<1x128xf32> to vector<8x128xf32>
    %5 = arith.addf %2, %4 : vector<8x128xf32>
    %cst_5 = arith.constant 0.000000e+00 : f32
    %6 = vector.broadcast %cst_5 : f32 to vector<8x128xf32>
    %7 = arith.maximumf %5, %6 : vector<8x128xf32>
    %c0_6 = arith.constant 0 : index
    %c0_7 = arith.constant 0 : index
    %8 = vector.load %arg8[%c0_6, %c0_7] : memref<8x128xf32, #tpu.memory_space<vmem>>, vector<8x128xf32>
    tpu.vector_store %arg8[%c0_6, %c0_7], %7 {strides = array<i32>} : memref<8x128xf32, #tpu.memory_space<vmem>>, vector<8x128xf32>,
    %c0_8 = arith.constant 0 : index
    %c0_9 = arith.constant 0 : index
    %9 = vector.load %arg4[%c0_8, %c0_9] : memref<128x128xf32, #tpu.memory_space<vmem>>, vector<128x128xf32>
    %cst_10 = arith.constant dense<0.000000e+00> : vector<8x128xf32>
    %10 = tpu.matmul %7, %9, %cst_10 {dimension_numbers = #tpu.dot_dimension_numbers<[1], [0], [0], [1], [0, 0, 1, 1], [], []>} : vector<8x128xf32>, vector<128x128xf32>, vector<8x128xf32> -> vector<8x128xf32>
    %c0_11 = arith.constant 0 : index
    %c0_12 = arith.constant 0 : index
    %11 = vector.load %arg5[%c0_11, %c0_12] : memref<1x128xf32, #tpu.memory_space<vmem>>, vector<1x128xf32>
    %12 = vector.broadcast %11 : vector<1x128xf32> to vector<8x128xf32>
    %13 = arith.addf %10, %12 : vector<8x128xf32>
    %14 = math.tanh %13 : vector<8x128xf32>
    %c0_13 = arith.constant 0 : index
    %c0_14 = arith.constant 0 : index
    %15 = vector.load %arg6[%c0_13, %c0_14] : memref<128x128xf32, #tpu.memory_space<vmem>>, vector<128x128xf32>
    %cst_15 = arith.constant dense<0.000000e+00> : vector<8x128xf32>
    %16 = tpu.matmul %14, %15, %cst_15 {dimension_numbers = #tpu.dot_dimension_numbers<[1], [0], [0], [1], [0, 0, 1, 1], [], []>} : vector<8x128xf32>, vector<128x128xf32>, vector<8x128xf32> -> vector<8x128xf32>
    %c0_16 = arith.constant 0 : index
    %c0_17 = arith.constant 0 : index
    %17 = vector.load %arg7[%c0_16, %c0_17] : memref<1x128xf32, #tpu.memory_space<vmem>>, vector<1x128xf32>
    %18 = vector.broadcast %17 : vector<1x128xf32> to vector<8x128xf32>
    %19 = arith.addf %16, %18 : vector<8x128xf32>
    %20 = math.tanh %19 : vector<8x128xf32>
    %c0_18 = arith.constant 0 : index
    %c0_19 = arith.constant 0 : index
    %21 = vector.load %arg9[%c0_18, %c0_19] : memref<8x128xf32, #tpu.memory_space<vmem>>, vector<8x128xf32>
    tpu.vector_store %arg9[%c0_18, %c0_19], %20 {strides = array<i32>} : memref<8x128xf32, #tpu.memory_space<vmem>>, vector<8x128xf32>,
    return
  }
  func.func @transform_0(%arg0: i32) -> (i32, i32) {
    %c0_i32 = arith.constant 0 : i32
    %c0_i32_0 = arith.constant 0 : i32
    return %arg0, %c0_i32 : i32, i32
  }
  func.func @transform_1(%arg0: i32) -> (i32, i32) {
    %c0_i32 = arith.constant 0 : i32
    %c0_i32_0 = arith.constant 0 : i32
    %c0_i32_1 = arith.constant 0 : i32
    return %c0_i32, %c0_i32_0 : i32, i32
  }
  func.func @transform_2(%arg0: i32) -> (i32, i32) {
    %c0_i32 = arith.constant 0 : i32
    %c0_i32_0 = arith.constant 0 : i32
    %c0_i32_1 = arith.constant 0 : i32
    return %c0_i32, %c0_i32_0 : i32, i32
  }
  func.func @transform_3(%arg0: i32) -> (i32, i32) {
    %c0_i32 = arith.constant 0 : i32
    %c0_i32_0 = arith.constant 0 : i32
    %c0_i32_1 = arith.constant 0 : i32
    return %c0_i32, %c0_i32_0 : i32, i32
  }
  func.func @transform_4(%arg0: i32) -> (i32, i32) {
    %c0_i32 = arith.constant 0 : i32
    %c0_i32_0 = arith.constant 0 : i32
    %c0_i32_1 = arith.constant 0 : i32
    return %c0_i32, %c0_i32_0 : i32, i32
  }
  func.func @transform_5(%arg0: i32) -> (i32, i32) {
    %c0_i32 = arith.constant 0 : i32
    %c0_i32_0 = arith.constant 0 : i32
    %c0_i32_1 = arith.constant 0 : i32
    return %c0_i32, %c0_i32_0 : i32, i32
  }
  func.func @transform_6(%arg0: i32) -> (i32, i32) {
    %c0_i32 = arith.constant 0 : i32
    %c0_i32_0 = arith.constant 0 : i32
    %c0_i32_1 = arith.constant 0 : i32
    return %c0_i32, %c0_i32_0 : i32, i32
  }
  func.func @transform_7(%arg0: i32) -> (i32, i32) {
    %c0_i32 = arith.constant 0 : i32
    %c0_i32_0 = arith.constant 0 : i32
    return %arg0, %c0_i32 : i32, i32
  }
  func.func @transform_8(%arg0: i32) -> (i32, i32) {
    %c0_i32 = arith.constant 0 : i32
    %c0_i32_0 = arith.constant 0 : i32
    return %arg0, %c0_i32 : i32, i32
  }
}

</mosaic_0001>

<llo_original>
// kernel: actor_policy_forward.1
$region0: #{actor_policy_forward.1}
  #allocation0 [shape = 'u32[]', space=smem, size = 0x4, offset = 0x4, fixed_abs, tag = 'smem constant byte address 0x4 - core index']
  #allocation1 [shape = 'u32[144,128]{1,0:T(1,128)}', space=vmem, size = 0x12000, scoped, tag = 'internal scratch']
  %s0 = inlined_call_operand.vmem [shape: f32[8,128], index: 0, kind: input, shape index: {}]
  %s1 = inlined_call_operand.vmem [shape: f32[128,128], index: 1, kind: input, shape index: {}]
  %s2 = inlined_call_operand.vmem [shape: f32[1,128], index: 2, kind: input, shape index: {}]
  %s3 = inlined_call_operand.vmem [shape: f32[128,128], index: 3, kind: input, shape index: {}]
  %s4 = inlined_call_operand.vmem [shape: f32[1,128], index: 4, kind: input, shape index: {}]
  %s5 = inlined_call_operand.vmem [shape: f32[128,128], index: 5, kind: input, shape index: {}]
  %s6 = inlined_call_operand.vmem [shape: f32[1,128], index: 6, kind: input, shape index: {}]
  %s7 = inlined_call_operand.hbm [shape: f32[8,128], index: 7, kind: output, shape index: {0}]
  %s8 = inlined_call_operand.vmem [shape: f32[8,128], index: 8, kind: output, shape index: {1}]
  %9 = xla_tuple %s7, %s8
  %s10 = sld [smem:[#allocation0]]
  $region46: #{actor_policy_forward.1} parent=0
    _
  %s12 = ssub.s32 1, %s10
  %s13 = scalar_select 0, %s12, %s10
  $region1: #{actor_policy_forward.1} parent=0
    #allocation2 [shape = 'u8[4096]{0}', space=vmem, size = 0x1000, scoped, tag = 'output window, operand 0, single buffered']
    #allocation3 [shape = 's32[1]{0}', space=sflag, size = 0x4, scoped, tag = 'scoped memory for actor_policy_forward.1']
    %14 = vsyncpa [#allocation3], 0
    // Predicated region
    $region2: #{actor_policy_forward.1} parent=1 // pred_check
      _
    $region3: #{actor_policy_forward.1} parent=1 // pred_check_branch
      %16 = sbr.rel (0) target = $region5
    $region4: #{actor_policy_forward.1} parent=1 // pred_region
      _
    $region5: #{actor_policy_forward.1} parent=1 // pred_fallthru
      _
    // Predicated region
    $region6: #{actor_policy_forward.1} parent=1 // pred_check
      _
    $region7: #{actor_policy_forward.1} parent=1 // pred_check_branch
      %18 = sbr.rel (0) target = $region9
    $region8: #{actor_policy_forward.1} parent=1 // pred_region
      _
    $region9: #{actor_policy_forward.1} parent=1 // pred_fallthru
      _
    // Predicated region
    $region10: #{actor_policy_forward.1} parent=1 // pred_check
      _
    $region11: #{actor_policy_forward.1} parent=1 // pred_check_branch
      %20 = sbr.rel (0) target = $region13
    $region12: #{actor_policy_forward.1} parent=1 // pred_region
      _
    $region13: #{actor_policy_forward.1} parent=1 // pred_fallthru
      _
    // Predicated region
    $region14: #{actor_policy_forward.1} parent=1 // pred_check
      _
    $region15: #{actor_policy_forward.1} parent=1 // pred_check_branch
      %22 = sbr.rel (0) target = $region17
    $region16: #{actor_policy_forward.1} parent=1 // pred_region
      _
    $region17: #{actor_policy_forward.1} parent=1 // pred_fallthru
      _
    // Predicated region
    $region18: #{actor_policy_forward.1} parent=1 // pred_check
      _
    $region19: #{actor_policy_forward.1} parent=1 // pred_check_branch
      %24 = sbr.rel (0) target = $region21
    $region20: #{actor_policy_forward.1} parent=1 // pred_region
      _
    $region21: #{actor_policy_forward.1} parent=1 // pred_fallthru
      _
    // Predicated region
    $region22: #{actor_policy_forward.1} parent=1 // pred_check
      _
    $region23: #{actor_policy_forward.1} parent=1 // pred_check_branch
      %26 = sbr.rel (0) target = $region25
    $region24: #{actor_policy_forward.1} parent=1 // pred_region
      _
    $region25: #{actor_policy_forward.1} parent=1 // pred_fallthru
      _
    // Predicated region
    $region26: #{actor_policy_forward.1} parent=1 // pred_check
      _
    $region27: #{actor_policy_forward.1} parent=1 // pred_check_branch
      %28 = sbr.rel (0) target = $region29
    $region28: #{actor_policy_forward.1} parent=1 // pred_region
      _
    $region29: #{actor_policy_forward.1} parent=1 // pred_fallthru
      _
    %v29 = vld [vmem:[%s0] sm:$0xff]
    %v30 = vld [vmem:[%s1] sm:$0xff]
    %v31 = vld [vmem:[%s1 + $0x8] sm:$0xff]
    %v32 = vld [vmem:[%s1 + $0x10] sm:$0xff]
    %v33 = vld [vmem:[%s1 + $0x18] sm:$0xff]
    %v34 = vld [vmem:[%s1 + $0x20] sm:$0xff]
    %v35 = vld [vmem:[%s1 + $0x28] sm:$0xff]
    %v36 = vld [vmem:[%s1 + $0x30] sm:$0xff]
    %v37 = vld [vmem:[%s1 + $0x38] sm:$0xff]
    %v38 = vld [vmem:[%s1 + $0x40] sm:$0xff]
    %v39 = vld [vmem:[%s1 + $0x48] sm:$0xff]
    %v40 = vld [vmem:[%s1 + $0x50] sm:$0xff]
    %v41 = vld [vmem:[%s1 + $0x58] sm:$0xff]
    %v42 = vld [vmem:[%s1 + $0x60] sm:$0xff]
    %v43 = vld [vmem:[%s1 + $0x68] sm:$0xff]
    %v44 = vld [vmem:[%s1 + $0x70] sm:$0xff]
    %v45 = vld [vmem:[%s1 + $0x78] sm:$0xff]
    %v46 = vld [vmem:[%s2] sm:$0x1]
    %v48 = vlaneseq
    %v49 = vshrl.u32 %v48, 7
    %v50 = vsub.s32 0, %v49
    %v51 = vrot.slane %v46, %v50
    %53 = vmatprep.subr.mxu0 0.0
    %54 = vmatpush1.msra.mxu0 %v30
    %55 = vmatprep.subr.mxu0 0.0
    %56 = vmatpush1.msra.mxu0 %v31
    %57 = vmatprep.subr.mxu0 0.0
    %58 = vmatpush1.msra.mxu0 %v32
    %59 = vmatprep.subr.mxu0 0.0
    %60 = vmatpush1.msra.mxu0 %v33
    %61 = vmatprep.subr.mxu0 0.0
    %62 = vmatpush1.msra.mxu0 %v34
    %63 = vmatprep.subr.mxu0 0.0
    %64 = vmatpush1.msra.mxu0 %v35
    %65 = vmatprep.subr.mxu0 0.0
    %66 = vmatpush1.msra.mxu0 %v36
    %67 = vmatprep.subr.mxu0 0.0
    %68 = vmatpush1.msra.mxu0 %v37
    %69 = vmatprep.subr.mxu0 0.0
    %70 = vmatpush1.msra.mxu0 %v38
    %71 = vmatprep.subr.mxu0 0.0
    %72 = vmatpush1.msra.mxu0 %v39
    %73 = vmatprep.subr.mxu0 0.0
    %74 = vmatpush1.msra.mxu0 %v40
    %75 = vmatprep.subr.mxu0 0.0
    %76 = vmatpush1.msra.mxu0 %v41
    %77 = vmatprep.subr.mxu0 0.0
    %78 = vmatpush1.msra.mxu0 %v42
    %79 = vmatprep.subr.mxu0 0.0
    %80 = vmatpush1.msra.mxu0 %v43
    %81 = vmatprep.subr.mxu0 0.0
    %82 = vmatpush1.msra.mxu0 %v44
    %83 = vmatprep.subr.mxu0 0.0
    %84 = vmatpush1.msra.mxu0 %v45
    %85 = vmatprep.subr.mxu0 0.0
    %86 = vmatpush1.msra.mxu0 0.0
    %87 = vmatprep.subr.mxu0 0.0
    %88 = vmatpush1.msra.mxu0 0.0
    %89 = vmatprep.subr.mxu0 0.0
    %90 = vmatpush1.msra.mxu0 0.0
    %91 = vmatprep.subr.mxu0 0.0
    %92 = vmatpush1.msra.mxu0 0.0
    %93 = vmatprep.subr.mxu0 0.0
    %94 = vmatpush1.msra.mxu0 0.0
    %95 = vmatprep.subr.mxu0 0.0
    %96 = vmatpush1.msra.mxu0 0.0
    %97 = vmatprep.subr.mxu0 0.0
    %98 = vmatpush1.msra.mxu0 0.0
    %99 = vmatprep.subr.mxu0 0.0
    %100 = vmatpush1.msra.mxu0 0.0
    %101 = vmatprep.subr.mxu0 0.0
    %102 = vmatpush1.msra.mxu0 0.0
    %103 = vmatprep.subr.mxu0 0.0
    %104 = vmatpush1.msra.mxu0 0.0
    %105 = vmatprep.subr.mxu0 0.0
    %106 = vmatpush1.msra.mxu0 0.0
    %107 = vmatprep.subr.mxu0 0.0
    %108 = vmatpush1.msra.mxu0 0.0
    %109 = vmatprep.subr.mxu0 0.0
    %110 = vmatpush1.msra.mxu0 0.0
    %111 = vmatprep.subr.mxu0 0.0
    %112 = vmatpush1.msra.mxu0 0.0
    %113 = vmatprep.subr.mxu0 0.0
    %114 = vmatpush1.msra.mxu0 0.0
    %115 = vmatprep.subr.mxu0 0.0
    %116 = vmatpush1.msra.mxu0 0.0
    %117 = vmatprep.mubr.f32.mxu0 0.0
    %118 = vmatmul.mubr.f32.gmra.mrb[0].mxu0 %v29
    %v119 = vpop.f32.mrb[0].mxu0
    %v120 = vadd.f32 %v51, %v119
    %v121 = vpop.f32.mrb[0].mxu0
    %122 = vdwg.mxu0
    %v123 = vmax.f32 %v120, 0.0
    %124 = vst [vmem:[#allocation2] sm:$0xff] %v123
    %v125 = vld [vmem:[%s3] sm:$0xff]
    %v126 = vld [vmem:[%s3 + $0x8] sm:$0xff]
    %v127 = vld [vmem:[%s3 + $0x10] sm:$0xff]
    %v128 = vld [vmem:[%s3 + $0x18] sm:$0xff]
    %v129 = vld [vmem:[%s3 + $0x20] sm:$0xff]
    %v130 = vld [vmem:[%s3 + $0x28] sm:$0xff]
    %v131 = vld [vmem:[%s3 + $0x30] sm:$0xff]
    %v132 = vld [vmem:[%s3 + $0x38] sm:$0xff]
    %v133 = vld [vmem:[%s3 + $0x40] sm:$0xff]
    %v134 = vld [vmem:[%s3 + $0x48] sm:$0xff]
    %v135 = vld [vmem:[%s3 + $0x50] sm:$0xff]
    %v136 = vld [vmem:[%s3 + $0x58] sm:$0xff]
    %v137 = vld [vmem:[%s3 + $0x60] sm:$0xff]
    %v138 = vld [vmem:[%s3 + $0x68] sm:$0xff]
    %v139 = vld [vmem:[%s3 + $0x70] sm:$0xff]
    %v140 = vld [vmem:[%s3 + $0x78] sm:$0xff]
    %v141 = vld [vmem:[%s4] sm:$0x1]
    %v143 = vlaneseq
    %v144 = vshrl.u32 %v143, 7
    %v145 = vsub.s32 0, %v144
    %v146 = vrot.slane %v141, %v145
    %148 = vmatprep.subr.mxu0 0.0
    %149 = vmatpush1.msra.mxu0 %v125
    %150 = vmatprep.subr.mxu0 0.0
    %151 = vmatpush1.msra.mxu0 %v126
    %152 = vmatprep.subr.mxu0 0.0
    %153 = vmatpush1.msra.mxu0 %v127
    %154 = vmatprep.subr.mxu0 0.0
    %155 = vmatpush1.msra.mxu0 %v128
    %156 = vmatprep.subr.mxu0 0.0
    %157 = vmatpush1.msra.mxu0 %v129
    %158 = vmatprep.subr.mxu0 0.0
    %159 = vmatpush1.msra.mxu0 %v130
    %160 = vmatprep.subr.mxu0 0.0
    %161 = vmatpush1.msra.mxu0 %v131
    %162 = vmatprep.subr.mxu0 0.0
    %163 = vmatpush1.msra.mxu0 %v132
    %164 = vmatprep.subr.mxu0 0.0
    %165 = vmatpush1.msra.mxu0 %v133
    %166 = vmatprep.subr.mxu0 0.0
    %167 = vmatpush1.msra.mxu0 %v134
    %168 = vmatprep.subr.mxu0 0.0
    %169 = vmatpush1.msra.mxu0 %v135
    %170 = vmatprep.subr.mxu0 0.0
    %171 = vmatpush1.msra.mxu0 %v136
    %172 = vmatprep.subr.mxu0 0.0
    %173 = vmatpush1.msra.mxu0 %v137
    %174 = vmatprep.subr.mxu0 0.0
    %175 = vmatpush1.msra.mxu0 %v138
    %176 = vmatprep.subr.mxu0 0.0
    %177 = vmatpush1.msra.mxu0 %v139
    %178 = vmatprep.subr.mxu0 0.0
    %179 = vmatpush1.msra.mxu0 %v140
    %180 = vmatprep.subr.mxu0 0.0
    %181 = vmatpush1.msra.mxu0 0.0
    %182 = vmatprep.subr.mxu0 0.0
    %183 = vmatpush1.msra.mxu0 0.0
    %184 = vmatprep.subr.mxu0 0.0
    %185 = vmatpush1.msra.mxu0 0.0
    %186 = vmatprep.subr.mxu0 0.0
    %187 = vmatpush1.msra.mxu0 0.0
    %188 = vmatprep.subr.mxu0 0.0
    %189 = vmatpush1.msra.mxu0 0.0
    %190 = vmatprep.subr.mxu0 0.0
    %191 = vmatpush1.msra.mxu0 0.0
    %192 = vmatprep.subr.mxu0 0.0
    %193 = vmatpush1.msra.mxu0 0.0
    %194 = vmatprep.subr.mxu0 0.0
    %195 = vmatpush1.msra.mxu0 0.0
    %196 = vmatprep.subr.mxu0 0.0
    %197 = vmatpush1.msra.mxu0 0.0
    %198 = vmatprep.subr.mxu0 0.0
    %199 = vmatpush1.msra.mxu0 0.0
    %200 = vmatprep.subr.mxu0 0.0
    %201 = vmatpush1.msra.mxu0 0.0
    %202 = vmatprep.subr.mxu0 0.0
    %203 = vmatpush1.msra.mxu0 0.0
    %204 = vmatprep.subr.mxu0 0.0
    %205 = vmatpush1.msra.mxu0 0.0
    %206 = vmatprep.subr.mxu0 0.0
    %207 = vmatpush1.msra.mxu0 0.0
    %208 = vmatprep.subr.mxu0 0.0
    %209 = vmatpush1.msra.mxu0 0.0
    %210 = vmatprep.subr.mxu0 0.0
    %211 = vmatpush1.msra.mxu0 0.0
    %212 = vmatprep.mubr.f32.mxu0 0.0
    %213 = vmatmul.mubr.f32.gmra.mrb[0].mxu0 %v123
    %v214 = vpop.f32.mrb[0].mxu0
    %v215 = vadd.f32 %v146, %v214
    %v216 = vpop.f32.mrb[0].mxu0
    %217 = vdwg.mxu0
    %v218 = vtanh.pop %v215
    %v219 = vld [vmem:[%s5] sm:$0xff]
    %v220 = vld [vmem:[%s5 + $0x8] sm:$0xff]
    %v221 = vld [vmem:[%s5 + $0x10] sm:$0xff]
    %v222 = vld [vmem:[%s5 + $0x18] sm:$0xff]
    %v223 = vld [vmem:[%s5 + $0x20] sm:$0xff]
    %v224 = vld [vmem:[%s5 + $0x28] sm:$0xff]
    %v225 = vld [vmem:[%s5 + $0x30] sm:$0xff]
    %v226 = vld [vmem:[%s5 + $0x38] sm:$0xff]
    %v227 = vld [vmem:[%s5 + $0x40] sm:$0xff]
    %v228 = vld [vmem:[%s5 + $0x48] sm:$0xff]
    %v229 = vld [vmem:[%s5 + $0x50] sm:$0xff]
    %v230 = vld [vmem:[%s5 + $0x58] sm:$0xff]
    %v231 = vld [vmem:[%s5 + $0x60] sm:$0xff]
    %v232 = vld [vmem:[%s5 + $0x68] sm:$0xff]
    %v233 = vld [vmem:[%s5 + $0x70] sm:$0xff]
    %v234 = vld [vmem:[%s5 + $0x78] sm:$0xff]
    %v235 = vld [vmem:[%s6] sm:$0x1]
    %v237 = vlaneseq
    %v238 = vshrl.u32 %v237, 7
    %v239 = vsub.s32 0, %v238
    %v240 = vrot.slane %v235, %v239
    %242 = vmatprep.subr.mxu0 0.0
    %243 = vmatpush1.msra.mxu0 %v219
    %244 = vmatprep.subr.mxu0 0.0
    %245 = vmatpush1.msra.mxu0 %v220
    %246 = vmatprep.subr.mxu0 0.0
    %247 = vmatpush1.msra.mxu0 %v221
    %248 = vmatprep.subr.mxu0 0.0
    %249 = vmatpush1.msra.mxu0 %v222
    %250 = vmatprep.subr.mxu0 0.0
    %251 = vmatpush1.msra.mxu0 %v223
    %252 = vmatprep.subr.mxu0 0.0
    %253 = vmatpush1.msra.mxu0 %v224
    %254 = vmatprep.subr.mxu0 0.0
    %255 = vmatpush1.msra.mxu0 %v225
    %256 = vmatprep.subr.mxu0 0.0
    %257 = vmatpush1.msra.mxu0 %v226
    %258 = vmatprep.subr.mxu0 0.0
    %259 = vmatpush1.msra.mxu0 %v227
    %260 = vmatprep.subr.mxu0 0.0
    %261 = vmatpush1.msra.mxu0 %v228
    %262 = vmatprep.subr.mxu0 0.0
    %263 = vmatpush1.msra.mxu0 %v229
    %264 = vmatprep.subr.mxu0 0.0
    %265 = vmatpush1.msra.mxu0 %v230
    %266 = vmatprep.subr.mxu0 0.0
    %267 = vmatpush1.msra.mxu0 %v231
    %268 = vmatprep.subr.mxu0 0.0
    %269 = vmatpush1.msra.mxu0 %v232
    %270 = vmatprep.subr.mxu0 0.0
    %271 = vmatpush1.msra.mxu0 %v233
    %272 = vmatprep.subr.mxu0 0.0
    %273 = vmatpush1.msra.mxu0 %v234
    %274 = vmatprep.subr.mxu0 0.0
    %275 = vmatpush1.msra.mxu0 0.0
    %276 = vmatprep.subr.mxu0 0.0
    %277 = vmatpush1.msra.mxu0 0.0
    %278 = vmatprep.subr.mxu0 0.0
    %279 = vmatpush1.msra.mxu0 0.0
    %280 = vmatprep.subr.mxu0 0.0
    %281 = vmatpush1.msra.mxu0 0.0
    %282 = vmatprep.subr.mxu0 0.0
    %283 = vmatpush1.msra.mxu0 0.0
    %284 = vmatprep.subr.mxu0 0.0
    %285 = vmatpush1.msra.mxu0 0.0
    %286 = vmatprep.subr.mxu0 0.0
    %287 = vmatpush1.msra.mxu0 0.0
    %288 = vmatprep.subr.mxu0 0.0
    %289 = vmatpush1.msra.mxu0 0.0
    %290 = vmatprep.subr.mxu0 0.0
    %291 = vmatpush1.msra.mxu0 0.0
    %292 = vmatprep.subr.mxu0 0.0
    %293 = vmatpush1.msra.mxu0 0.0
    %294 = vmatprep.subr.mxu0 0.0
    %295 = vmatpush1.msra.mxu0 0.0
    %296 = vmatprep.subr.mxu0 0.0
    %297 = vmatpush1.msra.mxu0 0.0
    %298 = vmatprep.subr.mxu0 0.0
    %299 = vmatpush1.msra.mxu0 0.0
    %300 = vmatprep.subr.mxu0 0.0
    %301 = vmatpush1.msra.mxu0 0.0
    %302 = vmatprep.subr.mxu0 0.0
    %303 = vmatpush1.msra.mxu0 0.0
    %304 = vmatprep.subr.mxu0 0.0
    %305 = vmatpush1.msra.mxu0 0.0
    %306 = vmatprep.mubr.f32.mxu0 0.0
    %307 = vmatmul.mubr.f32.gmra.mrb[0].mxu0 %v218
    %v308 = vpop.f32.mrb[0].mxu0
    %v309 = vadd.f32 %v240, %v308
    %v310 = vpop.f32.mrb[0].mxu0
    %311 = vdwg.mxu0
    %v312 = vtanh.pop %v309
    %313 = vst [vmem:[%s8] sm:$0xff] %v312
    // Predicated region
    $region30: #{actor_policy_forward.1} parent=1 // pred_check
      _
    $region31: #{actor_policy_forward.1} parent=1 // pred_check_branch
      %315 = sbr.rel (0) target = $region33
    $region32: #{actor_policy_forward.1} parent=1 // pred_region
      %s317 = ssub.s32 128, 128
      %318 = vsyncadd [#allocation3], %s317
      %s320 = sshll.u32 [#allocation2], 4
      %s321 = int_to_ptr.vmem [resolvable:$true] %s320
      %323 = dma.vmem_to_hbm [thread:$0]  %s321, 128, %s7, [#allocation3]
    $region33: #{actor_policy_forward.1} parent=1 // pred_fallthru
      _
    // Predicated region
    $region34: #{actor_policy_forward.1} parent=1 // pred_check
      _
    $region35: #{actor_policy_forward.1} parent=1 // pred_check_branch
      %325 = sbr.rel (0) target = $region37
    $region36: #{actor_policy_forward.1} parent=1 // pred_region
      _
    $region37: #{actor_policy_forward.1} parent=1 // pred_fallthru
      _
    // Predicated region
    $region38: #{actor_policy_forward.1} parent=1 // pred_check
      _
    $region39: #{actor_policy_forward.1} parent=1 // pred_check_branch
      %327 = sbr.rel (0) target = $region41
    $region40: #{actor_policy_forward.1} parent=1 // pred_region
      %328 = dma.done [#allocation3], 128
    $region41: #{actor_policy_forward.1} parent=1 // pred_fallthru
      _
    // Predicated region
    $region42: #{actor_policy_forward.1} parent=1 // pred_check
      _
    $region43: #{actor_policy_forward.1} parent=1 // pred_check_branch
      %330 = sbr.rel (0) target = $region45
    $region44: #{actor_policy_forward.1} parent=1 // pred_region
      _
    $region45: #{actor_policy_forward.1} parent=1 // pred_fallthru
      _
    %331 = vsyncpa [#allocation3], 1

</llo_original>
